<compile_context>
chip_gen: v7x
topology: tpu7x:2x2x1
jax: 0.10.0
libtpu: 0.0.40
codegen_flags: <defaults>
</compile_context>

<pallas_src>
import math
import functools

import jax
import jax.numpy as jnp
from jax import lax
from jax.experimental import pallas as pl
from jax.experimental.pallas import tpu as pltpu


def _round_up(x, n):
    return (x + n - 1) // n * n


def _aam_kernel(xs_ref, w_ref, lbl_ref, loss_ref, corr_ref,
                m_s, l_s, t_s,
                *, cos_m, sin_m, th, mm, s, n_class, tile_c, mask_classes):
    j = pl.program_id(1)
    n_j = pl.num_programs(1)
    is_last = j == n_j - 1

    # ---- per-batch-tile init (first class step) ---------------------------
    @pl.when(j == 0)
    def _init():
        m_s[...] = jnp.full(m_s.shape, -jnp.inf, m_s.dtype)
        l_s[...] = jnp.zeros(l_s.shape, l_s.dtype)
        t_s[...] = jnp.zeros(t_s.shape, t_s.dtype)

    # ---- scaled cosine tile on the MXU, transposed: (TC, TB) --------------
    # xs is already L2-normalized * s (bf16), w is L2-normalized (bf16),
    # so cos_t = s * cosine with f32 accumulation.
    cos_t = lax.dot_general(
        w_ref[...], xs_ref[...],
        dimension_numbers=(((1,), (1,)), ((), ())),
        preferred_element_type=jnp.float32)                 # (TC, TB) f32

    # one-hot: j-independent sublane iota vs. locally-shifted labels.
    lbl_local = lbl_ref[...] - tile_c * j                   # (1, TB) i32
    row_ids = lax.broadcasted_iota(jnp.int32, cos_t.shape, 0)
    one_hot = row_ids == lbl_local                          # (TC, TB) bool

    # ---- AAM margin, target column only ((1, TB) math) --------------------
    ct = jnp.sum(jnp.where(one_hot, cos_t, 0.0), axis=0, keepdims=True)  # s*cos
    c = ct * (1.0 / s)                                       # unscaled cosine
    sine = jnp.sqrt(jnp.clip(1.0 - c * c, 0.0, 1.0))
    phi_t = ct * cos_m - (s * sin_m) * sine                  # s * phi
    phi_t = jnp.where(c - th > 0, phi_t, ct - (s * mm))

    out = jnp.where(one_hot, phi_t, cos_t)                   # scaled logits

    # Target logit contribution for this class tile: (1, TB) select, exact.
    in_tile = jnp.logical_and(lbl_local >= 0, lbl_local < tile_c)
    tgt = jnp.where(in_tile, phi_t, 0.0)

    # ---- online accumulation (static-bound logsumexp: max logit <= s) -----
    def accumulate(out_tile):
        m_s[...] = jnp.maximum(m_s[...],
                               jnp.max(out_tile, axis=0, keepdims=True))
        l_s[...] = l_s[...] + jnp.sum(jnp.exp(out_tile - s),
                                      axis=0, keepdims=True)
        t_s[...] = t_s[...] + tgt

    if mask_classes:
        # Only the last class tile contains padded class ids; gate the
        # (load-bearing) -1e30 mask to that step only.
        @pl.when(j != n_j - 1)
        def _body_full():
            accumulate(out)

        @pl.when(is_last)
        def _body_masked():
            pad_ok = row_ids < (n_class - tile_c * j)
            accumulate(jnp.where(pad_ok, out, -1e30))
    else:
        accumulate(out)

    # ---- finalize: per-row CE loss and top-1 correctness -------------------
    @pl.when(is_last)
    def _finalize():
        loss_ref[...] = s + jnp.log(l_s[...]) - t_s[...]
        # top-1 correct  <=>  the margin-adjusted target logit attains the max
        corr_ref[...] = (t_s[...] == m_s[...]).astype(jnp.float32)


@functools.partial(jax.jit, static_argnames=("m", "s", "block_b", "block_c"))
def aam_softmax_forward(x, weight, label, *, m, s, block_b=256, block_c=2048):
    """Forward of AAMsoftmax. Returns (loss, prec1) like the nn.Module.

    Defaults are tuned for v6e/v7x; on v5e, block_c=1024 / block_b=128 may be
    preferable (MXU is 128-wide and HBM is slower).
    """
    B, D = x.shape
    C = weight.shape[0]

    cos_m = math.cos(m)
    sin_m = math.sin(m)
    th = math.cos(math.pi - m)
    mm = math.sin(math.pi - m) * m

    # Hoisted out of the kernel (one fused XLA pass each):
    #   * F.normalize(weight) in f32, cast to bf16.
    #   * F.normalize(x) in f32, folded * s, cast to bf16 -> the kernel matmul
    #     directly produces s*cosine with f32 MXU accumulation.
    wn = weight.astype(jnp.float32)
    wn = wn / jnp.maximum(jnp.linalg.norm(wn, axis=1, keepdims=True), 1e-12)
    xf = x.astype(jnp.float32)
    xn = xf / jnp.maximum(jnp.linalg.norm(xf, axis=1, keepdims=True), 1e-12)
    xs = (xn * float(s)).astype(jnp.bfloat16)

    # Tile / padding geometry (zero padding doesn't change dot products).
    Dp = _round_up(D, 128)                       # 192 -> 256 (lane/MXU aligned)
    TB = min(block_b, _round_up(B, 128))         # keep TB a multiple of 128
    B_pad = _round_up(B, TB)
    TC = min(block_c, _round_up(C, 256))         # keep TC a multiple of 256
    C_pad = _round_up(C, TC)

    xs_p = jnp.zeros((B_pad, Dp), jnp.bfloat16).at[:B, :D].set(xs)
    w_p = jnp.zeros((C_pad, Dp), jnp.bfloat16).at[:C, :D].set(
        wn.astype(jnp.bfloat16))
    lbl_p = jnp.zeros((1, B_pad), jnp.int32).at[0, :B].set(
        label.astype(jnp.int32))

    grid = (B_pad // TB, C_pad // TC)

    kernel = functools.partial(
        _aam_kernel,
        cos_m=cos_m, sin_m=sin_m, th=th, mm=mm, s=float(s),
        n_class=C, tile_c=TC, mask_classes=(C_pad != C))

    loss_row, corr_row = pl.pallas_call(
        kernel,
        out_shape=(
            jax.ShapeDtypeStruct((1, B_pad), jnp.float32),
            jax.ShapeDtypeStruct((1, B_pad), jnp.float32),
        ),
        grid_spec=pltpu.PrefetchScalarGridSpec(
            num_scalar_prefetch=0,
            grid=grid,
            in_specs=[
                pl.BlockSpec((TB, Dp), lambda i, j: (i, 0)),   # s * normalized x (bf16)
                pl.BlockSpec((TC, Dp), lambda i, j: (j, 0)),   # normalized W (bf16)
                pl.BlockSpec((1, TB), lambda i, j: (0, i)),    # labels
            ],
            out_specs=(
                pl.BlockSpec((1, TB), lambda i, j: (0, i)),    # per-row loss
                pl.BlockSpec((1, TB), lambda i, j: (0, i)),    # per-row top-1
            ),
            scratch_shapes=[
                pltpu.VMEM((1, TB), jnp.float32),   # running max (top-1 only)
                pltpu.VMEM((1, TB), jnp.float32),   # running sum exp(out - s)
                pltpu.VMEM((1, TB), jnp.float32),   # target logit
            ],
        ),
        compiler_params=pltpu.CompilerParams(
            dimension_semantics=("parallel", "arbitrary"),
            vmem_limit_bytes=48 * 1024 * 1024),
    )(xs_p, w_p, lbl_p)

    loss = jnp.mean(loss_row[0, :B])            # nn.CrossEntropyLoss 'mean'
    prec1 = 100.0 * jnp.mean(corr_row[0, :B])   # accuracy(..., topk=(1,)) in %
    return loss, prec1


def _reference_f32(x, weight, label, *, m, s):
    # Pure-JAX, full-f32, torch-faithful forward.
    cos_m, sin_m = math.cos(m), math.sin(m)
    th, mm = math.cos(math.pi - m), math.sin(math.pi - m) * m
    xn = x / jnp.maximum(jnp.linalg.norm(x, axis=1, keepdims=True), 1e-12)
    wn = weight / jnp.maximum(jnp.linalg.norm(weight, axis=1, keepdims=True),
                              1e-12)
    cosine = xn @ wn.T
    sine = jnp.sqrt(jnp.clip(1.0 - cosine * cosine, 0.0, 1.0))
    phi = cosine * cos_m - sine * sin_m
    phi = jnp.where(cosine - th > 0, phi, cosine - mm)
    one_hot = jax.nn.one_hot(label, weight.shape[0], dtype=cosine.dtype)
    output = (one_hot * phi + (1.0 - one_hot) * cosine) * s
    logp = jax.nn.log_softmax(output, axis=-1)
    loss = -jnp.mean(jnp.take_along_axis(logp, label[:, None], axis=1))
    prec1 = 100.0 * jnp.mean(
        (jnp.argmax(output, axis=1) == label).astype(jnp.float32))
    return loss, prec1


def _reference_kernel_numerics(x, weight, label, *, m, s):
    # Mirrors the kernel's bf16-operand, scaled-by-s matmul and scaled-space
    # margin algebra for a tight numerical check.
    cos_m, sin_m = math.cos(m), math.sin(m)
    th, mm = math.cos(math.pi - m), math.sin(math.pi - m) * m
    xn = x / jnp.maximum(jnp.linalg.norm(x, axis=1, keepdims=True), 1e-12)
    wn = weight / jnp.maximum(jnp.linalg.norm(weight, axis=1, keepdims=True),
                              1e-12)
    xs = (xn * s).astype(jnp.bfloat16)
    cos_s = jnp.dot(xs, wn.astype(jnp.bfloat16).T,
                    preferred_element_type=jnp.float32)      # s * cosine
    c = cos_s * (1.0 / s)
    sine = jnp.sqrt(jnp.clip(1.0 - c * c, 0.0, 1.0))
    phi_s = cos_s * cos_m - (s * sin_m) * sine
    phi_s = jnp.where(c - th > 0, phi_s, cos_s - s * mm)
    one_hot = label[:, None] == jnp.arange(weight.shape[0])[None, :]
    out = jnp.where(one_hot, phi_s, cos_s)
    logp = jax.nn.log_softmax(out, axis=-1)
    loss = -jnp.mean(jnp.take_along_axis(logp, label[:, None], axis=1))
    prec1 = 100.0 * jnp.mean(
        (jnp.argmax(out, axis=1) == label).astype(jnp.float32))
    return loss, prec1


if __name__ == "__main__":
    m, s = 0.2, 30.0
    D = 192  # fixed by the module (weight is (n_class, 192))

    cases = [
        # (B, n_class, tile overrides)
        (8, 128, {}),                                   # single weight tile
        (8, 600, dict(block_b=128, block_c=256)),       # streamed class tiles + pad mask
    ]

    for case_idx, (B, n_class, tiles) in enumerate(cases):
        key = jax.random.PRNGKey(0)
        kx, kw, kl = jax.random.split(key, 3)

        x = jax.random.normal(kx, (B, D), dtype=jnp.float32)
        # xavier_normal_(weight, gain=1): std = sqrt(2 / (fan_in + fan_out))
        std = math.sqrt(2.0 / (n_class + D))
        weight = std * jax.random.normal(kw, (n_class, D), dtype=jnp.float32)
        label = jax.random.randint(kl, (B,), 0, n_class, dtype=jnp.int32)

        loss, prec1 = jax.block_until_ready(
            aam_softmax_forward(x, weight, label, m=m, s=s, **tiles))

        # Tight check vs. a reference using the same bf16/scaled-operand math.
        ref_loss_b, ref_prec_b = _reference_kernel_numerics(
            x, weight, label, m=m, s=s)
        # Loose check vs. the full-f32 torch-faithful reference (bf16 MXU
        # operands shift cosine by ~1e-3; deliberate accuracy/throughput
        # trade-off).
        ref_loss_f, _ = _reference_f32(x, weight, label, m=m, s=s)

        assert jnp.isfinite(loss) and jnp.isfinite(prec1), (case_idx, loss, prec1)
        assert jnp.allclose(loss, ref_loss_b, rtol=1e-3, atol=1e-3), (
            case_idx, loss, ref_loss_b)
        assert jnp.allclose(prec1, ref_prec_b, atol=1e-3), (
            case_idx, prec1, ref_prec_b)
        assert jnp.allclose(loss, ref_loss_f, rtol=3e-2, atol=3e-2), (
            case_idx, loss, ref_loss_f)

    print("KERNEL_OK")
</pallas_src>

<mosaic_0001>
module attributes {stable_mosaic.version = 11 : i64} {
  func.func @_aam_kernel(%arg0: i32, %arg1: i32, %arg2: memref<128x256xbf16, #tpu.memory_space<vmem>>, %arg3: memref<256x256xbf16, #tpu.memory_space<vmem>>, %arg4: memref<1x128xi32, #tpu.memory_space<vmem>>, %arg5: memref<1x128xf32, #tpu.memory_space<vmem>>, %arg6: memref<1x128xf32, #tpu.memory_space<vmem>>, %arg7: memref<1x128xf32, #tpu.memory_space<vmem>>, %arg8: memref<1x128xf32, #tpu.memory_space<vmem>>, %arg9: memref<1x128xf32, #tpu.memory_space<vmem>>) attributes {dimension_semantics = [#tpu.dimension_semantics<parallel>, #tpu.dimension_semantics<arbitrary>], iteration_bounds = array<i64: 1, 1>, scalar_prefetch = 0 : i64, scratch_operands = 3 : i64, tpu.core_type = #tpu.core_type<tc>, window_params = [{transform_indices = @transform_0, window_bounds = array<i64: 128, 256>}, {transform_indices = @transform_1, window_bounds = array<i64: 256, 256>}, {transform_indices = @transform_2, window_bounds = array<i64: 1, 128>}, {transform_indices = @transform_3, window_bounds = array<i64: 1, 128>}, {transform_indices = @transform_4, window_bounds = array<i64: 1, 128>}]} {
    %c0_i32 = arith.constant 0 : i32
    %0 = arith.cmpi eq, %arg1, %c0_i32 : i32
    %c0_i32_0 = arith.constant 0 : i32
    %1 = arith.cmpi eq, %arg1, %c0_i32_0 : i32
    %2 = arith.extui %1 : i1 to i32
    %c0_i32_1 = arith.constant 0 : i32
    %3 = arith.cmpi ne, %2, %c0_i32_1 : i32
    scf.if %3 {
      %cst_25 = arith.constant 0xFF800000 : f32
      %57 = vector.broadcast %cst_25 : f32 to vector<1x128xf32>
      %c0_26 = arith.constant 0 : index
      %c0_27 = arith.constant 0 : index
      %58 = vector.load %arg7[%c0_26, %c0_27] : memref<1x128xf32, #tpu.memory_space<vmem>>, vector<1x128xf32>
      tpu.vector_store %arg7[%c0_26, %c0_27], %57 {strides = array<i32>} : memref<1x128xf32, #tpu.memory_space<vmem>>, vector<1x128xf32>,
      %cst_28 = arith.constant 0.000000e+00 : f32
      %59 = vector.broadcast %cst_28 : f32 to vector<1x128xf32>
      %c0_29 = arith.constant 0 : index
      %c0_30 = arith.constant 0 : index
      %60 = vector.load %arg8[%c0_29, %c0_30] : memref<1x128xf32, #tpu.memory_space<vmem>>, vector<1x128xf32>
      tpu.vector_store %arg8[%c0_29, %c0_30], %59 {strides = array<i32>} : memref<1x128xf32, #tpu.memory_space<vmem>>, vector<1x128xf32>,
      %cst_31 = arith.constant 0.000000e+00 : f32
      %61 = vector.broadcast %cst_31 : f32 to vector<1x128xf32>
      %c0_32 = arith.constant 0 : index
      %c0_33 = arith.constant 0 : index
      %62 = vector.load %arg9[%c0_32, %c0_33] : memref<1x128xf32, #tpu.memory_space<vmem>>, vector<1x128xf32>
      tpu.vector_store %arg9[%c0_32, %c0_33], %61 {strides = array<i32>} : memref<1x128xf32, #tpu.memory_space<vmem>>, vector<1x128xf32>,
    } else {
    }
    %c0 = arith.constant 0 : index
    %c0_2 = arith.constant 0 : index
    %4 = vector.load %arg3[%c0, %c0_2] : memref<256x256xbf16, #tpu.memory_space<vmem>>, vector<256x256xbf16>
    %c0_3 = arith.constant 0 : index
    %c0_4 = arith.constant 0 : index
    %5 = vector.load %arg2[%c0_3, %c0_4] : memref<128x256xbf16, #tpu.memory_space<vmem>>, vector<128x256xbf16>
    %cst = arith.constant dense<0.000000e+00> : vector<256x128xf32>
    %6 = tpu.matmul %4, %5, %cst {dimension_numbers = #tpu.dot_dimension_numbers<[1], [1], [0], [0], [0, 0, 1, 0], [], []>} : vector<256x256xbf16>, vector<128x256xbf16>, vector<256x128xf32> -> vector<256x128xf32>
    %c0_5 = arith.constant 0 : index
    %c0_6 = arith.constant 0 : index
    %7 = vector.load %arg4[%c0_5, %c0_6] : memref<1x128xi32, #tpu.memory_space<vmem>>, vector<1x128xi32>
    %c256_i32 = arith.constant 256 : i32
    %8 = arith.muli %c256_i32, %arg1 : i32
    %9 = vector.broadcast %8 : i32 to vector<1x128xi32>
    %10 = arith.subi %7, %9 : vector<1x128xi32>
    %11 = tpu.iota {dimensions = array<i32: 0>} : vector<256x128xi32>
    %12 = vector.broadcast %10 : vector<1x128xi32> to vector<256x128xi32>
    %13 = arith.cmpi eq, %11, %12 : vector<256x128xi32>
    %cst_7 = arith.constant 0.000000e+00 : f32
    %14 = vector.broadcast %cst_7 : f32 to vector<256x128xf32>
    %15 = arith.select %13, %6, %14 : vector<256x128xi1>, vector<256x128xf32>
    %cst_8 = arith.constant dense<0.000000e+00> : vector<128xf32>
    %16 = vector.multi_reduction <add>, %15, %cst_8 [0] : vector<256x128xf32> to vector<128xf32>
    %17 = vector.shape_cast %16 : vector<128xf32> to vector<1x128xf32>
    %cst_9 = arith.constant 0.0333333351 : f32
    %18 = vector.broadcast %cst_9 : f32 to vector<1x128xf32>
    %19 = arith.mulf %17, %18 : vector<1x128xf32>
    %20 = arith.mulf %19, %19 : vector<1x128xf32>
    %cst_10 = arith.constant 1.000000e+00 : f32
    %21 = vector.broadcast %cst_10 : f32 to vector<1x128xf32>
    %22 = arith.subf %21, %20 : vector<1x128xf32>
    %cst_11 = arith.constant 0.000000e+00 : f32
    %cst_12 = arith.constant 1.000000e+00 : f32
    %23 = vector.broadcast %cst_11 : f32 to vector<1x128xf32>
    %24 = arith.maximumf %23, %22 : vector<1x128xf32>
    %25 = vector.broadcast %cst_12 : f32 to vector<1x128xf32>
    %26 = arith.minimumf %25, %24 : vector<1x128xf32>
    %27 = math.sqrt %26 : vector<1x128xf32>
    %cst_13 = arith.constant 0.980066597 : f32
    %28 = vector.broadcast %cst_13 : f32 to vector<1x128xf32>
    %29 = arith.mulf %17, %28 : vector<1x128xf32>
    %cst_14 = arith.constant 5.960080e+00 : f32
    %30 = vector.broadcast %cst_14 : f32 to vector<1x128xf32>
    %31 = arith.mulf %30, %27 : vector<1x128xf32>
    %32 = arith.subf %29, %31 : vector<1x128xf32>
    %cst_15 = arith.constant -0.980066597 : f32
    %33 = vector.broadcast %cst_15 : f32 to vector<1x128xf32>
    %34 = arith.subf %19, %33 : vector<1x128xf32>
    %cst_16 = arith.constant 0.000000e+00 : f32
    %35 = vector.broadcast %cst_16 : f32 to vector<1x128xf32>
    %36 = arith.cmpf ogt, %34, %35 : vector<1x128xf32>
    %cst_17 = arith.constant 1.19201601 : f32
    %37 = vector.broadcast %cst_17 : f32 to vector<1x128xf32>
    %38 = arith.subf %17, %37 : vector<1x128xf32>
    %39 = arith.select %36, %32, %38 : vector<1x128xi1>, vector<1x128xf32>
    %40 = vector.shape_cast %39 : vector<1x128xf32> to vector<1x128xf32>
    %41 = vector.broadcast %40 : vector<1x128xf32> to vector<256x128xf32>
    %42 = arith.select %13, %41, %6 : vector<256x128xi1>, vector<256x128xf32>
    %c0_i32_18 = arith.constant 0 : i32
    %43 = vector.broadcast %c0_i32_18 : i32 to vector<1x128xi32>
    %44 = arith.cmpi sge, %10, %43 : vector<1x128xi32>
    %c256_i32_19 = arith.constant 256 : i32
    %45 = vector.broadcast %c256_i32_19 : i32 to vector<1x128xi32>
    %46 = arith.cmpi slt, %10, %45 : vector<1x128xi32>
    %47 = arith.andi %44, %46 : vector<1x128xi1>
    %cst_20 = arith.constant 0.000000e+00 : f32
    %48 = vector.broadcast %cst_20 : f32 to vector<1x128xf32>
    %49 = arith.select %47, %39, %48 : vector<1x128xi1>, vector<1x128xf32>
    %c0_i32_21 = arith.constant 0 : i32
    %50 = arith.cmpi ne, %arg1, %c0_i32_21 : i32
    %51 = arith.extui %50 : i1 to i32
    %c0_i32_22 = arith.constant 0 : i32
    %52 = arith.cmpi ne, %51, %c0_i32_22 : i32
    scf.if %52 {
      %c0_25 = arith.constant 0 : index
      %c0_26 = arith.constant 0 : index
      %57 = vector.load %arg7[%c0_25, %c0_26] : memref<1x128xf32, #tpu.memory_space<vmem>>, vector<1x128xf32>
      %cst_27 = arith.constant dense<0xFF800000> : vector<128xf32>
      %58 = vector.multi_reduction <maximumf>, %42, %cst_27 [0] : vector<256x128xf32> to vector<128xf32>
      %59 = vector.shape_cast %58 : vector<128xf32> to vector<1x128xf32>
      %60 = arith.maximumf %57, %59 : vector<1x128xf32>
      %c0_28 = arith.constant 0 : index
      %c0_29 = arith.constant 0 : index
      %61 = vector.load %arg7[%c0_28, %c0_29] : memref<1x128xf32, #tpu.memory_space<vmem>>, vector<1x128xf32>
      tpu.vector_store %arg7[%c0_28, %c0_29], %60 {strides = array<i32>} : memref<1x128xf32, #tpu.memory_space<vmem>>, vector<1x128xf32>,
      %c0_30 = arith.constant 0 : index
      %c0_31 = arith.constant 0 : index
      %62 = vector.load %arg8[%c0_30, %c0_31] : memref<1x128xf32, #tpu.memory_space<vmem>>, vector<1x128xf32>
      %cst_32 = arith.constant 3.000000e+01 : f32
      %63 = vector.broadcast %cst_32 : f32 to vector<256x128xf32>
      %64 = arith.subf %42, %63 : vector<256x128xf32>
      %65 = math.exp %64 : vector<256x128xf32>
      %cst_33 = arith.constant dense<0.000000e+00> : vector<128xf32>
      %66 = vector.multi_reduction <add>, %65, %cst_33 [0] : vector<256x128xf32> to vector<128xf32>
      %67 = vector.shape_cast %66 : vector<128xf32> to vector<1x128xf32>
      %68 = arith.addf %62, %67 : vector<1x128xf32>
      %c0_34 = arith.constant 0 : index
      %c0_35 = arith.constant 0 : index
      %69 = vector.load %arg8[%c0_34, %c0_35] : memref<1x128xf32, #tpu.memory_space<vmem>>, vector<1x128xf32>
      tpu.vector_store %arg8[%c0_34, %c0_35], %68 {strides = array<i32>} : memref<1x128xf32, #tpu.memory_space<vmem>>, vector<1x128xf32>,
      %c0_36 = arith.constant 0 : index
      %c0_37 = arith.constant 0 : index
      %70 = vector.load %arg9[%c0_36, %c0_37] : memref<1x128xf32, #tpu.memory_space<vmem>>, vector<1x128xf32>
      %71 = arith.addf %70, %49 : vector<1x128xf32>
      %c0_38 = arith.constant 0 : index
      %c0_39 = arith.constant 0 : index
      %72 = vector.load %arg9[%c0_38, %c0_39] : memref<1x128xf32, #tpu.memory_space<vmem>>, vector<1x128xf32>
      tpu.vector_store %arg9[%c0_38, %c0_39], %71 {strides = array<i32>} : memref<1x128xf32, #tpu.memory_space<vmem>>, vector<1x128xf32>,
    } else {
    }
    %53 = arith.extui %0 : i1 to i32
    %c0_i32_23 = arith.constant 0 : i32
    %54 = arith.cmpi ne, %53, %c0_i32_23 : i32
    scf.if %54 {
      %c256_i32_25 = arith.constant 256 : i32
      %57 = arith.muli %c256_i32_25, %arg1 : i32
      %c128_i32 = arith.constant 128 : i32
      %58 = arith.subi %c128_i32, %57 : i32
      %59 = vector.broadcast %58 : i32 to vector<256x128xi32>
      %60 = arith.cmpi slt, %11, %59 : vector<256x128xi32>
      %cst_26 = arith.constant -1.000000e+30 : f32
      %61 = vector.broadcast %cst_26 : f32 to vector<256x128xf32>
      %62 = arith.select %60, %42, %61 : vector<256x128xi1>, vector<256x128xf32>
      %c0_27 = arith.constant 0 : index
      %c0_28 = arith.constant 0 : index
      %63 = vector.load %arg7[%c0_27, %c0_28] : memref<1x128xf32, #tpu.memory_space<vmem>>, vector<1x128xf32>
      %cst_29 = arith.constant dense<0xFF800000> : vector<128xf32>
      %64 = vector.multi_reduction <maximumf>, %62, %cst_29 [0] : vector<256x128xf32> to vector<128xf32>
      %65 = vector.shape_cast %64 : vector<128xf32> to vector<1x128xf32>
      %66 = arith.maximumf %63, %65 : vector<1x128xf32>
      %c0_30 = arith.constant 0 : index
      %c0_31 = arith.constant 0 : index
      %67 = vector.load %arg7[%c0_30, %c0_31] : memref<1x128xf32, #tpu.memory_space<vmem>>, vector<1x128xf32>
      tpu.vector_store %arg7[%c0_30, %c0_31], %66 {strides = array<i32>} : memref<1x128xf32, #tpu.memory_space<vmem>>, vector<1x128xf32>,
      %c0_32 = arith.constant 0 : index
      %c0_33 = arith.constant 0 : index
      %68 = vector.load %arg8[%c0_32, %c0_33] : memref<1x128xf32, #tpu.memory_space<vmem>>, vector<1x128xf32>
      %cst_34 = arith.constant 3.000000e+01 : f32
      %69 = vector.broadcast %cst_34 : f32 to vector<256x128xf32>
      %70 = arith.subf %62, %69 : vector<256x128xf32>
      %71 = math.exp %70 : vector<256x128xf32>
      %cst_35 = arith.constant dense<0.000000e+00> : vector<128xf32>
      %72 = vector.multi_reduction <add>, %71, %cst_35 [0] : vector<256x128xf32> to vector<128xf32>
      %73 = vector.shape_cast %72 : vector<128xf32> to vector<1x128xf32>
      %74 = arith.addf %68, %73 : vector<1x128xf32>
      %c0_36 = arith.constant 0 : index
      %c0_37 = arith.constant 0 : index
      %75 = vector.load %arg8[%c0_36, %c0_37] : memref<1x128xf32, #tpu.memory_space<vmem>>, vector<1x128xf32>
      tpu.vector_store %arg8[%c0_36, %c0_37], %74 {strides = array<i32>} : memref<1x128xf32, #tpu.memory_space<vmem>>, vector<1x128xf32>,
      %c0_38 = arith.constant 0 : index
      %c0_39 = arith.constant 0 : index
      %76 = vector.load %arg9[%c0_38, %c0_39] : memref<1x128xf32, #tpu.memory_space<vmem>>, vector<1x128xf32>
      %77 = arith.addf %76, %49 : vector<1x128xf32>
      %c0_40 = arith.constant 0 : index
      %c0_41 = arith.constant 0 : index
      %78 = vector.load %arg9[%c0_40, %c0_41] : memref<1x128xf32, #tpu.memory_space<vmem>>, vector<1x128xf32>
      tpu.vector_store %arg9[%c0_40, %c0_41], %77 {strides = array<i32>} : memref<1x128xf32, #tpu.memory_space<vmem>>, vector<1x128xf32>,
    } else {
    }
    %55 = arith.extui %0 : i1 to i32
    %c0_i32_24 = arith.constant 0 : i32
    %56 = arith.cmpi ne, %55, %c0_i32_24 : i32
    scf.if %56 {
      %c0_25 = arith.constant 0 : index
      %c0_26 = arith.constant 0 : index
      %57 = vector.load %arg8[%c0_25, %c0_26] : memref<1x128xf32, #tpu.memory_space<vmem>>, vector<1x128xf32>
      %58 = math.log %57 : vector<1x128xf32>
      %cst_27 = arith.constant 3.000000e+01 : f32
      %59 = vector.broadcast %cst_27 : f32 to vector<1x128xf32>
      %60 = arith.addf %59, %58 : vector<1x128xf32>
      %c0_28 = arith.constant 0 : index
      %c0_29 = arith.constant 0 : index
      %61 = vector.load %arg9[%c0_28, %c0_29] : memref<1x128xf32, #tpu.memory_space<vmem>>, vector<1x128xf32>
      %62 = arith.subf %60, %61 : vector<1x128xf32>
      %c0_30 = arith.constant 0 : index
      %c0_31 = arith.constant 0 : index
      %63 = vector.load %arg5[%c0_30, %c0_31] : memref<1x128xf32, #tpu.memory_space<vmem>>, vector<1x128xf32>
      tpu.vector_store %arg5[%c0_30, %c0_31], %62 {strides = array<i32>} : memref<1x128xf32, #tpu.memory_space<vmem>>, vector<1x128xf32>,
      %c0_32 = arith.constant 0 : index
      %c0_33 = arith.constant 0 : index
      %64 = vector.load %arg9[%c0_32, %c0_33] : memref<1x128xf32, #tpu.memory_space<vmem>>, vector<1x128xf32>
      %c0_34 = arith.constant 0 : index
      %c0_35 = arith.constant 0 : index
      %65 = vector.load %arg7[%c0_34, %c0_35] : memref<1x128xf32, #tpu.memory_space<vmem>>, vector<1x128xf32>
      %66 = arith.cmpf oeq, %64, %65 : vector<1x128xf32>
      %67 = arith.extui %66 : vector<1x128xi1> to vector<1x128xi32>
      %68 = arith.sitofp %67 : vector<1x128xi32> to vector<1x128xf32>
      %c0_36 = arith.constant 0 : index
      %c0_37 = arith.constant 0 : index
      %69 = vector.load %arg6[%c0_36, %c0_37] : memref<1x128xf32, #tpu.memory_space<vmem>>, vector<1x128xf32>
      tpu.vector_store %arg6[%c0_36, %c0_37], %68 {strides = array<i32>} : memref<1x128xf32, #tpu.memory_space<vmem>>, vector<1x128xf32>,
    } else {
    }
    return
  }
  func.func @transform_0(%arg0: i32, %arg1: i32) -> (i32, i32) {
    %c0_i32 = arith.constant 0 : i32
    %c0_i32_0 = arith.constant 0 : i32
    return %arg0, %c0_i32 : i32, i32
  }
  func.func @transform_1(%arg0: i32, %arg1: i32) -> (i32, i32) {
    %c0_i32 = arith.constant 0 : i32
    %c0_i32_0 = arith.constant 0 : i32
    return %arg1, %c0_i32 : i32, i32
  }
  func.func @transform_2(%arg0: i32, %arg1: i32) -> (i32, i32) {
    %c0_i32 = arith.constant 0 : i32
    %c0_i32_0 = arith.constant 0 : i32
    return %c0_i32, %arg0 : i32, i32
  }
  func.func @transform_3(%arg0: i32, %arg1: i32) -> (i32, i32) {
    %c0_i32 = arith.constant 0 : i32
    %c0_i32_0 = arith.constant 0 : i32
    return %c0_i32, %arg0 : i32, i32
  }
  func.func @transform_4(%arg0: i32, %arg1: i32) -> (i32, i32) {
    %c0_i32 = arith.constant 0 : i32
    %c0_i32_0 = arith.constant 0 : i32
    return %c0_i32, %arg0 : i32, i32
  }
}

</mosaic_0001>

<llo_original>
// kernel: aam_softmax_forward.1
$region0: #{aam_softmax_forward.1}
  #allocation0 [shape = 'u32[]', space=smem, size = 0x4, offset = 0x4, fixed_abs, tag = 'smem constant byte address 0x4 - core index']
  #allocation1 [shape = 'u32[144,128]{1,0:T(1,128)}', space=vmem, size = 0x12000, scoped, tag = 'internal scratch']
  #allocation2 [shape = 'f32[1,128]{1,0:T(1,128)}', space=vmem, size = 0x200, scoped, tag = 'scratch operand']
  #allocation3 [shape = 'f32[1,128]{1,0:T(1,128)}', space=vmem, size = 0x200, scoped, tag = 'scratch operand']
  #allocation4 [shape = 'f32[1,128]{1,0:T(1,128)}', space=vmem, size = 0x200, scoped, tag = 'scratch operand']
  %s0 = inlined_call_operand.vmem [shape: bf16[128,256], index: 0, kind: input, shape index: {}]
  %s1 = inlined_call_operand.vmem [shape: bf16[256,256], index: 1, kind: input, shape index: {}]
  %s2 = inlined_call_operand.vmem [shape: s32[1,128], index: 2, kind: input, shape index: {}]
  %s3 = inlined_call_operand.vmem [shape: f32[1,128], index: 3, kind: output, shape index: {0}]
  %s4 = inlined_call_operand.vmem [shape: f32[1,128], index: 4, kind: output, shape index: {1}]
  %5 = xla_tuple %s3, %s4
  %s6 = sld [smem:[#allocation0]]
  $region42: #{aam_softmax_forward.1} parent=0
    _
  %s8 = ssub.s32 1, %s6
  %s9 = scalar_select 0, %s8, %s6
  // Predicated region
  $region2: #{aam_softmax_forward.1} parent=0 // pred_check
    _
  $region3: #{aam_softmax_forward.1} parent=0 // pred_check_branch
    %11 = sbr.rel (0) target = $region5
  $region4: #{aam_softmax_forward.1} parent=0 // pred_region
    _
  $region5: #{aam_softmax_forward.1} parent=0 // pred_fallthru
    _
  // Predicated region
  $region6: #{aam_softmax_forward.1} parent=0 // pred_check
    _
  $region7: #{aam_softmax_forward.1} parent=0 // pred_check_branch
    %13 = sbr.rel (0) target = $region9
  $region8: #{aam_softmax_forward.1} parent=0 // pred_region
    _
  $region9: #{aam_softmax_forward.1} parent=0 // pred_fallthru
    _
  // Predicated region
  $region10: #{aam_softmax_forward.1} parent=0 // pred_check
    _
  $region11: #{aam_softmax_forward.1} parent=0 // pred_check_branch
    %15 = sbr.rel (0) target = $region13
  $region12: #{aam_softmax_forward.1} parent=0 // pred_region
    _
  $region13: #{aam_softmax_forward.1} parent=0 // pred_fallthru
    _
  %p17 = scmp.eq.s32.totalorder 0, 0
  // Predicated region
  $region14: #{aam_softmax_forward.1} parent=0 // pred_check
    %p18 = pneg %p17
  $region15: #{aam_softmax_forward.1} parent=0 // pred_check_branch
    %20 = sbr.rel (%p18) target = $region17
  $region16: #{aam_softmax_forward.1} parent=0 // pred_region
    %21 = vst [vmem:[#allocation2] sm:$0x1] -inf
    %22 = vst [vmem:[#allocation3] sm:$0x1] 0.0
    %23 = vst [vmem:[#allocation4] sm:$0x1] 0.0
  $region17: #{aam_softmax_forward.1} parent=0 // pred_fallthru
    _
  %v24 = vld [vmem:[%s1] sm:$0xff]
  %v25 = vld [vmem:[%s1 + $0x8] sm:$0xff]
  %v26 = vld [vmem:[%s1 + $0x10] sm:$0xff]
  %v27 = vld [vmem:[%s1 + $0x18] sm:$0xff]
  %v28 = vld [vmem:[%s1 + $0x20] sm:$0xff]
  %v29 = vld [vmem:[%s1 + $0x28] sm:$0xff]
  %v30 = vld [vmem:[%s1 + $0x30] sm:$0xff]
  %v31 = vld [vmem:[%s1 + $0x38] sm:$0xff]
  %v32 = vld [vmem:[%s1 + $0x40] sm:$0xff]
  %v33 = vld [vmem:[%s1 + $0x48] sm:$0xff]
  %v34 = vld [vmem:[%s1 + $0x50] sm:$0xff]
  %v35 = vld [vmem:[%s1 + $0x58] sm:$0xff]
  %v36 = vld [vmem:[%s1 + $0x60] sm:$0xff]
  %v37 = vld [vmem:[%s1 + $0x68] sm:$0xff]
  %v38 = vld [vmem:[%s1 + $0x70] sm:$0xff]
  %v39 = vld [vmem:[%s1 + $0x78] sm:$0xff]
  %v40 = vld [vmem:[%s1 + $0x80] sm:$0xff]
  %v41 = vld [vmem:[%s1 + $0x88] sm:$0xff]
  %v42 = vld [vmem:[%s1 + $0x90] sm:$0xff]
  %v43 = vld [vmem:[%s1 + $0x98] sm:$0xff]
  %v44 = vld [vmem:[%s1 + $0xa0] sm:$0xff]
  %v45 = vld [vmem:[%s1 + $0xa8] sm:$0xff]
  %v46 = vld [vmem:[%s1 + $0xb0] sm:$0xff]
  %v47 = vld [vmem:[%s1 + $0xb8] sm:$0xff]
  %v48 = vld [vmem:[%s1 + $0xc0] sm:$0xff]
  %v49 = vld [vmem:[%s1 + $0xc8] sm:$0xff]
  %v50 = vld [vmem:[%s1 + $0xd0] sm:$0xff]
  %v51 = vld [vmem:[%s1 + $0xd8] sm:$0xff]
  %v52 = vld [vmem:[%s1 + $0xe0] sm:$0xff]
  %v53 = vld [vmem:[%s1 + $0xe8] sm:$0xff]
  %v54 = vld [vmem:[%s1 + $0xf0] sm:$0xff]
  %v55 = vld [vmem:[%s1 + $0xf8] sm:$0xff]
  %v56 = vld [vmem:[%s0] sm:$0xff]
  %v57 = vld [vmem:[%s0 + $0x8] sm:$0xff]
  %v58 = vld [vmem:[%s0 + $0x10] sm:$0xff]
  %v59 = vld [vmem:[%s0 + $0x18] sm:$0xff]
  %v60 = vld [vmem:[%s0 + $0x20] sm:$0xff]
  %v61 = vld [vmem:[%s0 + $0x28] sm:$0xff]
  %v62 = vld [vmem:[%s0 + $0x30] sm:$0xff]
  %v63 = vld [vmem:[%s0 + $0x38] sm:$0xff]
  %v64 = vld [vmem:[%s0 + $0x40] sm:$0xff]
  %v65 = vld [vmem:[%s0 + $0x48] sm:$0xff]
  %v66 = vld [vmem:[%s0 + $0x50] sm:$0xff]
  %v67 = vld [vmem:[%s0 + $0x58] sm:$0xff]
  %v68 = vld [vmem:[%s0 + $0x60] sm:$0xff]
  %v69 = vld [vmem:[%s0 + $0x68] sm:$0xff]
  %v70 = vld [vmem:[%s0 + $0x70] sm:$0xff]
  %v71 = vld [vmem:[%s0 + $0x78] sm:$0xff]
  %v104 = vunpack.c.l.b16 %v24
  %v105 = vunpack.c.h.b16 %v24
  %v106 = vunpack.c.l.b16 %v25
  %v107 = vunpack.c.h.b16 %v25
  %v108 = vunpack.c.l.b16 %v26
  %v109 = vunpack.c.h.b16 %v26
  %v110 = vunpack.c.l.b16 %v27
  %v111 = vunpack.c.h.b16 %v27
  %v112 = vunpack.c.l.b16 %v28
  %v113 = vunpack.c.h.b16 %v28
  %v114 = vunpack.c.l.b16 %v29
  %v115 = vunpack.c.h.b16 %v29
  %v116 = vunpack.c.l.b16 %v30
  %v117 = vunpack.c.h.b16 %v30
  %v118 = vunpack.c.l.b16 %v31
  %v119 = vunpack.c.h.b16 %v31
  %v120 = vunpack.c.l.b16 %v32
  %v121 = vunpack.c.h.b16 %v32
  %v122 = vunpack.c.l.b16 %v33
  %v123 = vunpack.c.h.b16 %v33
  %v124 = vunpack.c.l.b16 %v34
  %v125 = vunpack.c.h.b16 %v34
  %v126 = vunpack.c.l.b16 %v35
  %v127 = vunpack.c.h.b16 %v35
  %v128 = vunpack.c.l.b16 %v36
  %v129 = vunpack.c.h.b16 %v36
  %v130 = vunpack.c.l.b16 %v37
  %v131 = vunpack.c.h.b16 %v37
  %v132 = vunpack.c.l.b16 %v38
  %v133 = vunpack.c.h.b16 %v38
  %v134 = vunpack.c.l.b16 %v39
  %v135 = vunpack.c.h.b16 %v39
  %v136 = vunpack.c.l.b16 %v40
  %v137 = vunpack.c.h.b16 %v40
  %v138 = vunpack.c.l.b16 %v41
  %v139 = vunpack.c.h.b16 %v41
  %v140 = vunpack.c.l.b16 %v42
  %v141 = vunpack.c.h.b16 %v42
  %v142 = vunpack.c.l.b16 %v43
  %v143 = vunpack.c.h.b16 %v43
  %v144 = vunpack.c.l.b16 %v44
  %v145 = vunpack.c.h.b16 %v44
  %v146 = vunpack.c.l.b16 %v45
  %v147 = vunpack.c.h.b16 %v45
  %v148 = vunpack.c.l.b16 %v46
  %v149 = vunpack.c.h.b16 %v46
  %v150 = vunpack.c.l.b16 %v47
  %v151 = vunpack.c.h.b16 %v47
  %v152 = vunpack.c.l.b16 %v48
  %v153 = vunpack.c.h.b16 %v48
  %v154 = vunpack.c.l.b16 %v49
  %v155 = vunpack.c.h.b16 %v49
  %v156 = vunpack.c.l.b16 %v50
  %v157 = vunpack.c.h.b16 %v50
  %v158 = vunpack.c.l.b16 %v51
  %v159 = vunpack.c.h.b16 %v51
  %v160 = vunpack.c.l.b16 %v52
  %v161 = vunpack.c.h.b16 %v52
  %v162 = vunpack.c.l.b16 %v53
  %v163 = vunpack.c.h.b16 %v53
  %v164 = vunpack.c.l.b16 %v54
  %v165 = vunpack.c.h.b16 %v54
  %v166 = vunpack.c.l.b16 %v55
  %v167 = vunpack.c.h.b16 %v55
  %v168 = vpack.c.b16 %v106, %v104
  %v169 = vpack.c.b16 %v107, %v105
  %v170 = vpack.c.b16 %v110, %v108
  %v171 = vpack.c.b16 %v111, %v109
  %v172 = vpack.c.b16 %v114, %v112
  %v173 = vpack.c.b16 %v115, %v113
  %v174 = vpack.c.b16 %v118, %v116
  %v175 = vpack.c.b16 %v119, %v117
  %v176 = vpack.c.b16 %v122, %v120
  %v177 = vpack.c.b16 %v123, %v121
  %v178 = vpack.c.b16 %v126, %v124
  %v179 = vpack.c.b16 %v127, %v125
  %v180 = vpack.c.b16 %v130, %v128
  %v181 = vpack.c.b16 %v131, %v129
  %v182 = vpack.c.b16 %v134, %v132
  %v183 = vpack.c.b16 %v135, %v133
  %v184 = vpack.c.b16 %v138, %v136
  %v185 = vpack.c.b16 %v139, %v137
  %v186 = vpack.c.b16 %v142, %v140
  %v187 = vpack.c.b16 %v143, %v141
  %v188 = vpack.c.b16 %v146, %v144
  %v189 = vpack.c.b16 %v147, %v145
  %v190 = vpack.c.b16 %v150, %v148
  %v191 = vpack.c.b16 %v151, %v149
  %v192 = vpack.c.b16 %v154, %v152
  %v193 = vpack.c.b16 %v155, %v153
  %v194 = vpack.c.b16 %v158, %v156
  %v195 = vpack.c.b16 %v159, %v157
  %v196 = vpack.c.b16 %v162, %v160
  %v197 = vpack.c.b16 %v163, %v161
  %v198 = vpack.c.b16 %v166, %v164
  %v199 = vpack.c.b16 %v167, %v165
  %v248 = vunpack.c.l.b16 %v56
  %v249 = vunpack.c.h.b16 %v56
  %v250 = vunpack.c.l.b16 %v57
  %v251 = vunpack.c.h.b16 %v57
  %v252 = vunpack.c.l.b16 %v58
  %v253 = vunpack.c.h.b16 %v58
  %v254 = vunpack.c.l.b16 %v59
  %v255 = vunpack.c.h.b16 %v59
  %v256 = vunpack.c.l.b16 %v60
  %v257 = vunpack.c.h.b16 %v60
  %v258 = vunpack.c.l.b16 %v61
  %v259 = vunpack.c.h.b16 %v61
  %v260 = vunpack.c.l.b16 %v62
  %v261 = vunpack.c.h.b16 %v62
  %v262 = vunpack.c.l.b16 %v63
  %v263 = vunpack.c.h.b16 %v63
  %v264 = vunpack.c.l.b16 %v64
  %v265 = vunpack.c.h.b16 %v64
  %v266 = vunpack.c.l.b16 %v65
  %v267 = vunpack.c.h.b16 %v65
  %v268 = vunpack.c.l.b16 %v66
  %v269 = vunpack.c.h.b16 %v66
  %v270 = vunpack.c.l.b16 %v67
  %v271 = vunpack.c.h.b16 %v67
  %v272 = vunpack.c.l.b16 %v68
  %v273 = vunpack.c.h.b16 %v68
  %v274 = vunpack.c.l.b16 %v69
  %v275 = vunpack.c.h.b16 %v69
  %v276 = vunpack.c.l.b16 %v70
  %v277 = vunpack.c.h.b16 %v70
  %v278 = vunpack.c.l.b16 %v71
  %v279 = vunpack.c.h.b16 %v71
  %v280 = vpack.c.b16 %v250, %v248
  %v281 = vpack.c.b16 %v251, %v249
  %v282 = vpack.c.b16 %v254, %v252
  %v283 = vpack.c.b16 %v255, %v253
  %v284 = vpack.c.b16 %v258, %v256
  %v285 = vpack.c.b16 %v259, %v257
  %v286 = vpack.c.b16 %v262, %v260
  %v287 = vpack.c.b16 %v263, %v261
  %v288 = vpack.c.b16 %v266, %v264
  %v289 = vpack.c.b16 %v267, %v265
  %v290 = vpack.c.b16 %v270, %v268
  %v291 = vpack.c.b16 %v271, %v269
  %v292 = vpack.c.b16 %v274, %v272
  %v293 = vpack.c.b16 %v275, %v273
  %v294 = vpack.c.b16 %v278, %v276
  %v295 = vpack.c.b16 %v279, %v277
  %312 = vmatprep.subr.bf16.mxu0 %v281
  %313 = vmatpush1.bf16.xpose.msra.mxu0 %v280
  %314 = vmatprep.subr.bf16.mxu0 %v283
  %315 = vmatpush1.bf16.xpose.msra.mxu0 %v282
  %316 = vmatprep.subr.bf16.mxu0 %v285
  %317 = vmatpush1.bf16.xpose.msra.mxu0 %v284
  %318 = vmatprep.subr.bf16.mxu0 %v287
  %319 = vmatpush1.bf16.xpose.msra.mxu0 %v286
  %320 = vmatprep.subr.bf16.mxu0 %v289
  %321 = vmatpush1.bf16.xpose.msra.mxu0 %v288
  %322 = vmatprep.subr.bf16.mxu0 %v291
  %323 = vmatpush1.bf16.xpose.msra.mxu0 %v290
  %324 = vmatprep.subr.bf16.mxu0 %v293
  %325 = vmatpush1.bf16.xpose.msra.mxu0 %v292
  %326 = vmatprep.subr.bf16.mxu0 %v295
  %327 = vmatpush1.bf16.xpose.msra.mxu0 %v294
  %328 = vmatprep.subr.bf16.mxu0 0
  %329 = vmatpush1.bf16.xpose.msra.mxu0 0
  %330 = vmatprep.subr.bf16.mxu0 0
  %331 = vmatpush1.bf16.xpose.msra.mxu0 0
  %332 = vmatprep.subr.bf16.mxu0 0
  %333 = vmatpush1.bf16.xpose.msra.mxu0 0
  %334 = vmatprep.subr.bf16.mxu0 0
  %335 = vmatpush1.bf16.xpose.msra.mxu0 0
  %336 = vmatprep.subr.bf16.mxu0 0
  %337 = vmatpush1.bf16.xpose.msra.mxu0 0
  %338 = vmatprep.subr.bf16.mxu0 0
  %339 = vmatpush1.bf16.xpose.msra.mxu0 0
  %340 = vmatprep.subr.bf16.mxu0 0
  %341 = vmatpush1.bf16.xpose.msra.mxu0 0
  %342 = vmatprep.subr.bf16.mxu0 0
  %343 = vmatpush1.bf16.xpose.msra.mxu0 0
  %344 = vmatprep.mubr.bf16.mxu0 %v169
  %345 = vmatmul.mubr.bf16.gmra.mrb[0].mxu0 %v168
  %v346 = vpop.f32.mrb[0].mxu0
  %v347 = vadd.f32 0.0, %v346
  %v348 = vpop.f32.mrb[0].mxu0
  %v349 = vpop.f32.mrb[0].mxu0
  %v350 = vadd.f32 0.0, %v349
  %v351 = vpop.f32.mrb[0].mxu0
  %352 = vmatprep.mubr.bf16.mxu0 %v171
  %353 = vmatmul.mubr.bf16.gmra.mrb[0].mxu0 %v170
  %v354 = vpop.f32.mrb[0].mxu0
  %v355 = vadd.f32 0.0, %v354
  %v356 = vpop.f32.mrb[0].mxu0
  %v357 = vpop.f32.mrb[0].mxu0
  %v358 = vadd.f32 0.0, %v357
  %v359 = vpop.f32.mrb[0].mxu0
  %360 = vmatprep.mubr.bf16.mxu0 %v173
  %361 = vmatmul.mubr.bf16.gmra.mrb[0].mxu0 %v172
  %v362 = vpop.f32.mrb[0].mxu0
  %v363 = vadd.f32 0.0, %v362
  %v364 = vpop.f32.mrb[0].mxu0
  %v365 = vpop.f32.mrb[0].mxu0
  %v366 = vadd.f32 0.0, %v365
  %v367 = vpop.f32.mrb[0].mxu0
  %368 = vmatprep.mubr.bf16.mxu0 %v175
  %369 = vmatmul.mubr.bf16.gmra.mrb[0].mxu0 %v174
  %v370 = vpop.f32.mrb[0].mxu0
  %v371 = vadd.f32 0.0, %v370
  %v372 = vpop.f32.mrb[0].mxu0
  %v373 = vpop.f32.mrb[0].mxu0
  %v374 = vadd.f32 0.0, %v373
  %v375 = vpop.f32.mrb[0].mxu0
  %376 = vmatprep.mubr.bf16.mxu0 %v177
  %377 = vmatmul.mubr.bf16.gmra.mrb[0].mxu0 %v176
  %v378 = vpop.f32.mrb[0].mxu0
  %v379 = vadd.f32 0.0, %v378
  %v380 = vpop.f32.mrb[0].mxu0
  %v381 = vpop.f32.mrb[0].mxu0
  %v382 = vadd.f32 0.0, %v381
  %v383 = vpop.f32.mrb[0].mxu0
  %384 = vmatprep.mubr.bf16.mxu0 %v179
  %385 = vmatmul.mubr.bf16.gmra.mrb[0].mxu0 %v178
  %v386 = vpop.f32.mrb[0].mxu0
  %v387 = vadd.f32 0.0, %v386
  %v388 = vpop.f32.mrb[0].mxu0
  %v389 = vpop.f32.mrb[0].mxu0
  %v390 = vadd.f32 0.0, %v389
  %v391 = vpop.f32.mrb[0].mxu0
  %392 = vmatprep.mubr.bf16.mxu0 %v181
  %393 = vmatmul.mubr.bf16.gmra.mrb[0].mxu0 %v180
  %v394 = vpop.f32.mrb[0].mxu0
  %v395 = vadd.f32 0.0, %v394
  %v396 = vpop.f32.mrb[0].mxu0
  %v397 = vpop.f32.mrb[0].mxu0
  %v398 = vadd.f32 0.0, %v397
  %v399 = vpop.f32.mrb[0].mxu0
  %400 = vmatprep.mubr.bf16.mxu0 %v183
  %401 = vmatmul.mubr.bf16.gmra.mrb[0].mxu0 %v182
  %v402 = vpop.f32.mrb[0].mxu0
  %v403 = vadd.f32 0.0, %v402
  %v404 = vpop.f32.mrb[0].mxu0
  %v405 = vpop.f32.mrb[0].mxu0
  %v406 = vadd.f32 0.0, %v405
  %v407 = vpop.f32.mrb[0].mxu0
  %408 = vmatprep.mubr.bf16.mxu0 %v185
  %409 = vmatmul.mubr.bf16.gmra.mrb[0].mxu0 %v184
  %v410 = vpop.f32.mrb[0].mxu0
  %v411 = vadd.f32 0.0, %v410
  %v412 = vpop.f32.mrb[0].mxu0
  %v413 = vpop.f32.mrb[0].mxu0
  %v414 = vadd.f32 0.0, %v413
  %v415 = vpop.f32.mrb[0].mxu0
  %416 = vmatprep.mubr.bf16.mxu0 %v187
  %417 = vmatmul.mubr.bf16.gmra.mrb[0].mxu0 %v186
  %v418 = vpop.f32.mrb[0].mxu0
  %v419 = vadd.f32 0.0, %v418
  %v420 = vpop.f32.mrb[0].mxu0
  %v421 = vpop.f32.mrb[0].mxu0
  %v422 = vadd.f32 0.0, %v421
  %v423 = vpop.f32.mrb[0].mxu0
  %424 = vmatprep.mubr.bf16.mxu0 %v189
  %425 = vmatmul.mubr.bf16.gmra.mrb[0].mxu0 %v188
  %v426 = vpop.f32.mrb[0].mxu0
  %v427 = vadd.f32 0.0, %v426
  %v428 = vpop.f32.mrb[0].mxu0
  %v429 = vpop.f32.mrb[0].mxu0
  %v430 = vadd.f32 0.0, %v429
  %v431 = vpop.f32.mrb[0].mxu0
  %432 = vmatprep.mubr.bf16.mxu0 %v191
  %433 = vmatmul.mubr.bf16.gmra.mrb[0].mxu0 %v190
  %v434 = vpop.f32.mrb[0].mxu0
  %v435 = vadd.f32 0.0, %v434
  %v436 = vpop.f32.mrb[0].mxu0
  %v437 = vpop.f32.mrb[0].mxu0
  %v438 = vadd.f32 0.0, %v437
  %v439 = vpop.f32.mrb[0].mxu0
  %440 = vmatprep.mubr.bf16.mxu0 %v193
  %441 = vmatmul.mubr.bf16.gmra.mrb[0].mxu0 %v192
  %v442 = vpop.f32.mrb[0].mxu0
  %v443 = vadd.f32 0.0, %v442
  %v444 = vpop.f32.mrb[0].mxu0
  %v445 = vpop.f32.mrb[0].mxu0
  %v446 = vadd.f32 0.0, %v445
  %v447 = vpop.f32.mrb[0].mxu0
  %448 = vmatprep.mubr.bf16.mxu0 %v195
  %449 = vmatmul.mubr.bf16.gmra.mrb[0].mxu0 %v194
  %v450 = vpop.f32.mrb[0].mxu0
  %v451 = vadd.f32 0.0, %v450
  %v452 = vpop.f32.mrb[0].mxu0
  %v453 = vpop.f32.mrb[0].mxu0
  %v454 = vadd.f32 0.0, %v453
  %v455 = vpop.f32.mrb[0].mxu0
  %456 = vmatprep.mubr.bf16.mxu0 %v197
  %457 = vmatmul.mubr.bf16.gmra.mrb[0].mxu0 %v196
  %v458 = vpop.f32.mrb[0].mxu0
  %v459 = vadd.f32 0.0, %v458
  %v460 = vpop.f32.mrb[0].mxu0
  %v461 = vpop.f32.mrb[0].mxu0
  %v462 = vadd.f32 0.0, %v461
  %v463 = vpop.f32.mrb[0].mxu0
  %464 = vmatprep.mubr.bf16.mxu0 %v199
  %465 = vmatmul.mubr.bf16.gmra.mrb[0].mxu0 %v198
  %v466 = vpop.f32.mrb[0].mxu0
  %v467 = vadd.f32 0.0, %v466
  %v468 = vpop.f32.mrb[0].mxu0
  %v469 = vpop.f32.mrb[0].mxu0
  %v470 = vadd.f32 0.0, %v469
  %v471 = vpop.f32.mrb[0].mxu0
  %472 = vdwg.mxu0
  %v473 = vld [vmem:[%s2] sm:$0x1]
  %s474 = smul.u32 0, 256
  %v475 = vstv %s474
  %v476 = vsub.s32 %v473, %v475
  %v477 = vlaneseq
  %v478 = vshrl.u32 %v477, 7
  %v479 = vadd.s32 %v478, 8
  %v480 = vadd.s32 %v478, 16
  %v481 = vadd.s32 %v478, 24
  %v482 = vadd.s32 %v478, 32
  %v483 = vadd.s32 %v478, 40
  %v484 = vadd.s32 %v478, 48
  %v485 = vadd.s32 %v478, 56
  %v486 = vadd.s32 %v478, 64
  %v487 = vadd.s32 %v478, 72
  %v488 = vadd.s32 %v478, 80
  %v489 = vadd.s32 %v478, 88
  %v490 = vadd.s32 %v478, 96
  %v491 = vadd.s32 %v478, 104
  %v492 = vadd.s32 %v478, 112
  %v493 = vadd.s32 %v478, 120
  %v494 = vadd.s32 %v478, 128
  %v495 = vadd.s32 %v478, 136
  %v496 = vadd.s32 %v478, 144
  %v497 = vadd.s32 %v478, 152
  %v498 = vadd.s32 %v478, 160
  %v499 = vadd.s32 %v478, 168
  %v500 = vadd.s32 %v478, 176
  %v501 = vadd.s32 %v478, 184
  %v502 = vadd.s32 %v478, 192
  %v503 = vadd.s32 %v478, 200
  %v504 = vadd.s32 %v478, 208
  %v505 = vadd.s32 %v478, 216
  %v506 = vadd.s32 %v478, 224
  %v507 = vadd.s32 %v478, 232
  %v508 = vadd.s32 %v478, 240
  %v509 = vadd.s32 %v478, 248
  %v510 = vlaneseq
  %v511 = vshrl.u32 %v510, 7
  %v512 = vsub.s32 0, %v511
  %v513 = vrot.slane %v476, %v512
  %vm514 = vcmp.eq.s32.totalorder %v478, %v513
  %vm515 = vcmp.eq.s32.totalorder %v479, %v513
  %vm516 = vcmp.eq.s32.totalorder %v480, %v513
  %vm517 = vcmp.eq.s32.totalorder %v481, %v513
  %vm518 = vcmp.eq.s32.totalorder %v482, %v513
  %vm519 = vcmp.eq.s32.totalorder %v483, %v513
  %vm520 = vcmp.eq.s32.totalorder %v484, %v513
  %vm521 = vcmp.eq.s32.totalorder %v485, %v513
  %vm522 = vcmp.eq.s32.totalorder %v486, %v513
  %vm523 = vcmp.eq.s32.totalorder %v487, %v513
  %vm524 = vcmp.eq.s32.totalorder %v488, %v513
  %vm525 = vcmp.eq.s32.totalorder %v489, %v513
  %vm526 = vcmp.eq.s32.totalorder %v490, %v513
  %vm527 = vcmp.eq.s32.totalorder %v491, %v513
  %vm528 = vcmp.eq.s32.totalorder %v492, %v513
  %vm529 = vcmp.eq.s32.totalorder %v493, %v513
  %vm530 = vcmp.eq.s32.totalorder %v494, %v513
  %vm531 = vcmp.eq.s32.totalorder %v495, %v513
  %vm532 = vcmp.eq.s32.totalorder %v496, %v513
  %vm533 = vcmp.eq.s32.totalorder %v497, %v513
  %vm534 = vcmp.eq.s32.totalorder %v498, %v513
  %vm535 = vcmp.eq.s32.totalorder %v499, %v513
  %vm536 = vcmp.eq.s32.totalorder %v500, %v513
  %vm537 = vcmp.eq.s32.totalorder %v501, %v513
  %vm538 = vcmp.eq.s32.totalorder %v502, %v513
  %vm539 = vcmp.eq.s32.totalorder %v503, %v513
  %vm540 = vcmp.eq.s32.totalorder %v504, %v513
  %vm541 = vcmp.eq.s32.totalorder %v505, %v513
  %vm542 = vcmp.eq.s32.totalorder %v506, %v513
  %vm543 = vcmp.eq.s32.totalorder %v507, %v513
  %vm544 = vcmp.eq.s32.totalorder %v508, %v513
  %vm545 = vcmp.eq.s32.totalorder %v509, %v513
  %v546 = vsel %vm514, %v347, 0.0
  %v547 = vsel %vm515, %v350, 0.0
  %v548 = vsel %vm516, %v355, 0.0
  %v549 = vsel %vm517, %v358, 0.0
  %v550 = vsel %vm518, %v363, 0.0
  %v551 = vsel %vm519, %v366, 0.0
  %v552 = vsel %vm520, %v371, 0.0
  %v553 = vsel %vm521, %v374, 0.0
  %v554 = vsel %vm522, %v379, 0.0
  %v555 = vsel %vm523, %v382, 0.0
  %v556 = vsel %vm524, %v387, 0.0
  %v557 = vsel %vm525, %v390, 0.0
  %v558 = vsel %vm526, %v395, 0.0
  %v559 = vsel %vm527, %v398, 0.0
  %v560 = vsel %vm528, %v403, 0.0
  %v561 = vsel %vm529, %v406, 0.0
  %v562 = vsel %vm530, %v411, 0.0
  %v563 = vsel %vm531, %v414, 0.0
  %v564 = vsel %vm532, %v419, 0.0
  %v565 = vsel %vm533, %v422, 0.0
  %v566 = vsel %vm534, %v427, 0.0
  %v567 = vsel %vm535, %v430, 0.0
  %v568 = vsel %vm536, %v435, 0.0
  %v569 = vsel %vm537, %v438, 0.0
  %v570 = vsel %vm538, %v443, 0.0
  %v571 = vsel %vm539, %v446, 0.0
  %v572 = vsel %vm540, %v451, 0.0
  %v573 = vsel %vm541, %v454, 0.0
  %v574 = vsel %vm542, %v459, 0.0
  %v575 = vsel %vm543, %v462, 0.0
  %v576 = vsel %vm544, %v467, 0.0
  %v577 = vsel %vm545, %v470, 0.0
  %v578 = vadd.f32 %v546, %v547
  %v579 = vadd.f32 %v578, %v548
  %v580 = vadd.f32 %v579, %v549
  %v581 = vadd.f32 %v580, %v550
  %v582 = vadd.f32 %v581, %v551
  %v583 = vadd.f32 %v582, %v552
  %v584 = vadd.f32 %v583, %v553
  %v585 = vadd.f32 %v584, %v554
  %v586 = vadd.f32 %v585, %v555
  %v587 = vadd.f32 %v586, %v556
  %v588 = vadd.f32 %v587, %v557
  %v589 = vadd.f32 %v588, %v558
  %v590 = vadd.f32 %v589, %v559
  %v591 = vadd.f32 %v590, %v560
  %v592 = vadd.f32 %v591, %v561
  %v593 = vadd.f32 %v592, %v562
  %v594 = vadd.f32 %v593, %v563
  %v595 = vadd.f32 %v594, %v564
  %v596 = vadd.f32 %v595, %v565
  %v597 = vadd.f32 %v596, %v566
  %v598 = vadd.f32 %v597, %v567
  %v599 = vadd.f32 %v598, %v568
  %v600 = vadd.f32 %v599, %v569
  %v601 = vadd.f32 %v600, %v570
  %v602 = vadd.f32 %v601, %v571
  %v603 = vadd.f32 %v602, %v572
  %v604 = vadd.f32 %v603, %v573
  %v605 = vadd.f32 %v604, %v574
  %v606 = vadd.f32 %v605, %v575
  %v607 = vadd.f32 %v606, %v576
  %v608 = vadd.f32 %v607, %v577
  %v609 = vrot.slane %v608, 4
  %v610 = vadd.f32 %v608, %v609
  %v611 = vrot.slane %v610, 2
  %v612 = vadd.f32 %v610, %v611
  %v613 = vrot.slane %v612, 1
  %v614 = vadd.f32 %v612, %v613
  %v615 = vmul.f32 %v614, 0.033333335
  %v616 = vmul.f32 %v615, %v615
  %v617 = vsub.f32 1.0, %v616
  %v618 = vmax.f32 %v617, 0.0
  %v619 = vmin.f32 %v618, 1.0
  %v620 = vrsqrt.pop %v619
  %v621 = vmul.f32 %v619, %v620
  %vm622 = vcmp.eq.f32.partialorder %v619, inf
  %v623 = vsel %vm622, %v619, %v621
  %vm624 = vcmp.eq.f32.partialorder %v619, 0.0
  %v625 = vand.u32 %v619, 2147483648
  %v626 = vsel %vm624, %v625, %v623
  %v627 = vmul.f32 %v614, 0.9800666
  %v628 = vmul.f32 %v626, 5.96008
  %v629 = vsub.f32 %v627, %v628
  %v630 = vsub.f32 %v615, -0.9800666
  %vm631 = vcmp.gt.f32.partialorder %v630, 0.0
  %v632 = vsub.f32 %v614, 1.192016
  %v633 = vsel %vm631, %v629, %v632
  %v634 = vsel %vm514, %v633, %v347
  %v635 = vsel %vm515, %v633, %v350
  %v636 = vsel %vm516, %v633, %v355
  %v637 = vsel %vm517, %v633, %v358
  %v638 = vsel %vm518, %v633, %v363
  %v639 = vsel %vm519, %v633, %v366
  %v640 = vsel %vm520, %v633, %v371
  %v641 = vsel %vm521, %v633, %v374
  %v642 = vsel %vm522, %v633, %v379
  %v643 = vsel %vm523, %v633, %v382
  %v644 = vsel %vm524, %v633, %v387
  %v645 = vsel %vm525, %v633, %v390
  %v646 = vsel %vm526, %v633, %v395
  %v647 = vsel %vm527, %v633, %v398
  %v648 = vsel %vm528, %v633, %v403
  %v649 = vsel %vm529, %v633, %v406
  %v650 = vsel %vm530, %v633, %v411
  %v651 = vsel %vm531, %v633, %v414
  %v652 = vsel %vm532, %v633, %v419
  %v653 = vsel %vm533, %v633, %v422
  %v654 = vsel %vm534, %v633, %v427
  %v655 = vsel %vm535, %v633, %v430
  %v656 = vsel %vm536, %v633, %v435
  %v657 = vsel %vm537, %v633, %v438
  %v658 = vsel %vm538, %v633, %v443
  %v659 = vsel %vm539, %v633, %v446
  %v660 = vsel %vm540, %v633, %v451
  %v661 = vsel %vm541, %v633, %v454
  %v662 = vsel %vm542, %v633, %v459
  %v663 = vsel %vm543, %v633, %v462
  %v664 = vsel %vm544, %v633, %v467
  %v665 = vsel %vm545, %v633, %v470
  %vm666 = vcmp.ge.s32.totalorder %v476, 0
  %vm667 = vcmp.lt.s32.totalorder %v476, 256
  %vm668 = vmand %vm666, %vm667
  %v669 = vsel %vm668, %v633, 0.0
  %p670 = scmp.ne.s32.totalorder 0, 0
  // Predicated region
  $region18: #{aam_softmax_forward.1} parent=0 // pred_check
    %p671 = pneg %p670
  $region19: #{aam_softmax_forward.1} parent=0 // pred_check_branch
    %673 = sbr.rel (%p671) target = $region21
  $region20: #{aam_softmax_forward.1} parent=0 // pred_region
    %v674 = vld [vmem:[#allocation2] sm:$0x1]
    %v675 = vmax.f32 %v634, %v638
    %v676 = vmax.f32 %v635, %v639
    %v677 = vmax.f32 %v636, %v640
    %v678 = vmax.f32 %v637, %v641
    %v679 = vmax.f32 %v675, %v642
    %v680 = vmax.f32 %v676, %v643
    %v681 = vmax.f32 %v677, %v644
    %v682 = vmax.f32 %v678, %v645
    %v683 = vmax.f32 %v679, %v646
    %v684 = vmax.f32 %v680, %v647
    %v685 = vmax.f32 %v681, %v648
    %v686 = vmax.f32 %v682, %v649
    %v687 = vmax.f32 %v683, %v650
    %v688 = vmax.f32 %v684, %v651
    %v689 = vmax.f32 %v685, %v652
    %v690 = vmax.f32 %v686, %v653
    %v691 = vmax.f32 %v687, %v654
    %v692 = vmax.f32 %v688, %v655
    %v693 = vmax.f32 %v689, %v656
    %v694 = vmax.f32 %v690, %v657
    %v695 = vmax.f32 %v691, %v658
    %v696 = vmax.f32 %v692, %v659
    %v697 = vmax.f32 %v693, %v660
    %v698 = vmax.f32 %v694, %v661
    %v699 = vmax.f32 %v695, %v662
    %v700 = vmax.f32 %v696, %v663
    %v701 = vmax.f32 %v697, %v664
    %v702 = vmax.f32 %v698, %v665
    %v703 = vmax.f32 %v699, %v700
    %v704 = vmax.f32 %v701, %v702
    %v705 = vmax.f32 %v703, %v704
    %v706 = vrot.slane %v705, 4
    %v707 = vmax.f32 %v705, %v706
    %v708 = vrot.slane %v707, 2
    %v709 = vmax.f32 %v707, %v708
    %v710 = vrot.slane %v709, 1
    %v711 = vmax.f32 %v709, %v710
    %v712 = vmax.f32 %v674, %v711
    %713 = vst [vmem:[#allocation2] sm:$0x1] %v712
    %v714 = vld [vmem:[#allocation3] sm:$0x1]
    %v715 = vsub.f32 %v634, 30.0
    %v716 = vsub.f32 %v635, 30.0
    %v717 = vsub.f32 %v636, 30.0
    %v718 = vsub.f32 %v637, 30.0
    %v719 = vsub.f32 %v638, 30.0
    %v720 = vsub.f32 %v639, 30.0
    %v721 = vsub.f32 %v640, 30.0
    %v722 = vsub.f32 %v641, 30.0
    %v723 = vsub.f32 %v642, 30.0
    %v724 = vsub.f32 %v643, 30.0
    %v725 = vsub.f32 %v644, 30.0
    %v726 = vsub.f32 %v645, 30.0
    %v727 = vsub.f32 %v646, 30.0
    %v728 = vsub.f32 %v647, 30.0
    %v729 = vsub.f32 %v648, 30.0
    %v730 = vsub.f32 %v649, 30.0
    %v731 = vsub.f32 %v650, 30.0
    %v732 = vsub.f32 %v651, 30.0
    %v733 = vsub.f32 %v652, 30.0
    %v734 = vsub.f32 %v653, 30.0
    %v735 = vsub.f32 %v654, 30.0
    %v736 = vsub.f32 %v655, 30.0
    %v737 = vsub.f32 %v656, 30.0
    %v738 = vsub.f32 %v657, 30.0
    %v739 = vsub.f32 %v658, 30.0
    %v740 = vsub.f32 %v659, 30.0
    %v741 = vsub.f32 %v660, 30.0
    %v742 = vsub.f32 %v661, 30.0
    %v743 = vsub.f32 %v662, 30.0
    %v744 = vsub.f32 %v663, 30.0
    %v745 = vsub.f32 %v664, 30.0
    %v746 = vsub.f32 %v665, 30.0
    %v747 = vmul.f32 %v715, 1.442695
    %v748 = vpow.pop %v747
    %v749 = vmul.f32 %v716, 1.442695
    %v750 = vpow.pop %v749
    %v751 = vmul.f32 %v717, 1.442695
    %v752 = vpow.pop %v751
    %v753 = vmul.f32 %v718, 1.442695
    %v754 = vpow.pop %v753
    %v755 = vmul.f32 %v719, 1.442695
    %v756 = vpow.pop %v755
    %v757 = vmul.f32 %v720, 1.442695
    %v758 = vpow.pop %v757
    %v759 = vmul.f32 %v721, 1.442695
    %v760 = vpow.pop %v759
    %v761 = vmul.f32 %v722, 1.442695
    %v762 = vpow.pop %v761
    %v763 = vmul.f32 %v723, 1.442695
    %v764 = vpow.pop %v763
    %v765 = vmul.f32 %v724, 1.442695
    %v766 = vpow.pop %v765
    %v767 = vmul.f32 %v725, 1.442695
    %v768 = vpow.pop %v767
    %v769 = vmul.f32 %v726, 1.442695
    %v770 = vpow.pop %v769
    %v771 = vmul.f32 %v727, 1.442695
    %v772 = vpow.pop %v771
    %v773 = vmul.f32 %v728, 1.442695
    %v774 = vpow.pop %v773
    %v775 = vmul.f32 %v729, 1.442695
    %v776 = vpow.pop %v775
    %v777 = vmul.f32 %v730, 1.442695
    %v778 = vpow.pop %v777
    %v779 = vmul.f32 %v731, 1.442695
    %v780 = vpow.pop %v779
    %v781 = vmul.f32 %v732, 1.442695
    %v782 = vpow.pop %v781
    %v783 = vmul.f32 %v733, 1.442695
    %v784 = vpow.pop %v783
    %v785 = vmul.f32 %v734, 1.442695
    %v786 = vpow.pop %v785
    %v787 = vmul.f32 %v735, 1.442695
    %v788 = vpow.pop %v787
    %v789 = vmul.f32 %v736, 1.442695
    %v790 = vpow.pop %v789
    %v791 = vmul.f32 %v737, 1.442695
    %v792 = vpow.pop %v791
    %v793 = vmul.f32 %v738, 1.442695
    %v794 = vpow.pop %v793
    %v795 = vmul.f32 %v739, 1.442695
    %v796 = vpow.pop %v795
    %v797 = vmul.f32 %v740, 1.442695
    %v798 = vpow.pop %v797
    %v799 = vmul.f32 %v741, 1.442695
    %v800 = vpow.pop %v799
    %v801 = vmul.f32 %v742, 1.442695
    %v802 = vpow.pop %v801
    %v803 = vmul.f32 %v743, 1.442695
    %v804 = vpow.pop %v803
    %v805 = vmul.f32 %v744, 1.442695
    %v806 = vpow.pop %v805
    %v807 = vmul.f32 %v745, 1.442695
    %v808 = vpow.pop %v807
    %v809 = vmul.f32 %v746, 1.442695
    %v810 = vpow.pop %v809
    %v811 = vadd.f32 %v748, %v750
    %v812 = vadd.f32 %v811, %v752
    %v813 = vadd.f32 %v812, %v754
    %v814 = vadd.f32 %v813, %v756
    %v815 = vadd.f32 %v814, %v758
    %v816 = vadd.f32 %v815, %v760
    %v817 = vadd.f32 %v816, %v762
    %v818 = vadd.f32 %v817, %v764
    %v819 = vadd.f32 %v818, %v766
    %v820 = vadd.f32 %v819, %v768
    %v821 = vadd.f32 %v820, %v770
    %v822 = vadd.f32 %v821, %v772
    %v823 = vadd.f32 %v822, %v774
    %v824 = vadd.f32 %v823, %v776
    %v825 = vadd.f32 %v824, %v778
    %v826 = vadd.f32 %v825, %v780
    %v827 = vadd.f32 %v826, %v782
    %v828 = vadd.f32 %v827, %v784
    %v829 = vadd.f32 %v828, %v786
    %v830 = vadd.f32 %v829, %v788
    %v831 = vadd.f32 %v830, %v790
    %v832 = vadd.f32 %v831, %v792
    %v833 = vadd.f32 %v832, %v794
    %v834 = vadd.f32 %v833, %v796
    %v835 = vadd.f32 %v834, %v798
    %v836 = vadd.f32 %v835, %v800
    %v837 = vadd.f32 %v836, %v802
    %v838 = vadd.f32 %v837, %v804
    %v839 = vadd.f32 %v838, %v806
    %v840 = vadd.f32 %v839, %v808
    %v841 = vadd.f32 %v840, %v810
    %v842 = vrot.slane %v841, 4
    %v843 = vadd.f32 %v841, %v842
    %v844 = vrot.slane %v843, 2
    %v845 = vadd.f32 %v843, %v844
    %v846 = vrot.slane %v845, 1
    %v847 = vadd.f32 %v845, %v846
    %v848 = vadd.f32 %v714, %v847
    %849 = vst [vmem:[#allocation3] sm:$0x1] %v848
    %v850 = vld [vmem:[#allocation4] sm:$0x1]
    %v851 = vadd.f32 %v850, %v669
    %852 = vst [vmem:[#allocation4] sm:$0x1] %v851
  $region21: #{aam_softmax_forward.1} parent=0 // pred_fallthru
    _
  // Predicated region
  $region22: #{aam_softmax_forward.1} parent=0 // pred_check
    %p853 = pneg %p17
  $region23: #{aam_softmax_forward.1} parent=0 // pred_check_branch
    %855 = sbr.rel (%p853) target = $region25
  $region24: #{aam_softmax_forward.1} parent=0 // pred_region
    %s856 = ssub.s32 128, %s474
    %v857 = vstv %s856
    %vm858 = vcmp.lt.s32.totalorder %v478, %v857
    %vm859 = vcmp.lt.s32.totalorder %v479, %v857
    %vm860 = vcmp.lt.s32.totalorder %v480, %v857
    %vm861 = vcmp.lt.s32.totalorder %v481, %v857
    %vm862 = vcmp.lt.s32.totalorder %v482, %v857
    %vm863 = vcmp.lt.s32.totalorder %v483, %v857
    %vm864 = vcmp.lt.s32.totalorder %v484, %v857
    %vm865 = vcmp.lt.s32.totalorder %v485, %v857
    %vm866 = vcmp.lt.s32.totalorder %v486, %v857
    %vm867 = vcmp.lt.s32.totalorder %v487, %v857
    %vm868 = vcmp.lt.s32.totalorder %v488, %v857
    %vm869 = vcmp.lt.s32.totalorder %v489, %v857
    %vm870 = vcmp.lt.s32.totalorder %v490, %v857
    %vm871 = vcmp.lt.s32.totalorder %v491, %v857
    %vm872 = vcmp.lt.s32.totalorder %v492, %v857
    %vm873 = vcmp.lt.s32.totalorder %v493, %v857
    %vm874 = vcmp.lt.s32.totalorder %v494, %v857
    %vm875 = vcmp.lt.s32.totalorder %v495, %v857
    %vm876 = vcmp.lt.s32.totalorder %v496, %v857
    %vm877 = vcmp.lt.s32.totalorder %v497, %v857
    %vm878 = vcmp.lt.s32.totalorder %v498, %v857
    %vm879 = vcmp.lt.s32.totalorder %v499, %v857
    %vm880 = vcmp.lt.s32.totalorder %v500, %v857
    %vm881 = vcmp.lt.s32.totalorder %v501, %v857
    %vm882 = vcmp.lt.s32.totalorder %v502, %v857
    %vm883 = vcmp.lt.s32.totalorder %v503, %v857
    %vm884 = vcmp.lt.s32.totalorder %v504, %v857
    %vm885 = vcmp.lt.s32.totalorder %v505, %v857
    %vm886 = vcmp.lt.s32.totalorder %v506, %v857
    %vm887 = vcmp.lt.s32.totalorder %v507, %v857
    %vm888 = vcmp.lt.s32.totalorder %v508, %v857
    %vm889 = vcmp.lt.s32.totalorder %v509, %v857
    %v890 = vsel %vm858, %v634, -1e+30
    %v891 = vsel %vm859, %v635, -1e+30
    %v892 = vsel %vm860, %v636, -1e+30
    %v893 = vsel %vm861, %v637, -1e+30
    %v894 = vsel %vm862, %v638, -1e+30
    %v895 = vsel %vm863, %v639, -1e+30
    %v896 = vsel %vm864, %v640, -1e+30
    %v897 = vsel %vm865, %v641, -1e+30
    %v898 = vsel %vm866, %v642, -1e+30
    %v899 = vsel %vm867, %v643, -1e+30
    %v900 = vsel %vm868, %v644, -1e+30
    %v901 = vsel %vm869, %v645, -1e+30
    %v902 = vsel %vm870, %v646, -1e+30
    %v903 = vsel %vm871, %v647, -1e+30
    %v904 = vsel %vm872, %v648, -1e+30
    %v905 = vsel %vm873, %v649, -1e+30
    %v906 = vsel %vm874, %v650, -1e+30
    %v907 = vsel %vm875, %v651, -1e+30
    %v908 = vsel %vm876, %v652, -1e+30
    %v909 = vsel %vm877, %v653, -1e+30
    %v910 = vsel %vm878, %v654, -1e+30
    %v911 = vsel %vm879, %v655, -1e+30
    %v912 = vsel %vm880, %v656, -1e+30
    %v913 = vsel %vm881, %v657, -1e+30
    %v914 = vsel %vm882, %v658, -1e+30
    %v915 = vsel %vm883, %v659, -1e+30
    %v916 = vsel %vm884, %v660, -1e+30
    %v917 = vsel %vm885, %v661, -1e+30
    %v918 = vsel %vm886, %v662, -1e+30
    %v919 = vsel %vm887, %v663, -1e+30
    %v920 = vsel %vm888, %v664, -1e+30
    %v921 = vsel %vm889, %v665, -1e+30
    %v922 = vld [vmem:[#allocation2] sm:$0x1]
    %v923 = vmax.f32 %v890, %v894
    %v924 = vmax.f32 %v891, %v895
    %v925 = vmax.f32 %v892, %v896
    %v926 = vmax.f32 %v893, %v897
    %v927 = vmax.f32 %v923, %v898
    %v928 = vmax.f32 %v924, %v899
    %v929 = vmax.f32 %v925, %v900
    %v930 = vmax.f32 %v926, %v901
    %v931 = vmax.f32 %v927, %v902
    %v932 = vmax.f32 %v928, %v903
    %v933 = vmax.f32 %v929, %v904
    %v934 = vmax.f32 %v930, %v905
    %v935 = vmax.f32 %v931, %v906
    %v936 = vmax.f32 %v932, %v907
    %v937 = vmax.f32 %v933, %v908
    %v938 = vmax.f32 %v934, %v909
    %v939 = vmax.f32 %v935, %v910
    %v940 = vmax.f32 %v936, %v911
    %v941 = vmax.f32 %v937, %v912
    %v942 = vmax.f32 %v938, %v913
    %v943 = vmax.f32 %v939, %v914
    %v944 = vmax.f32 %v940, %v915
    %v945 = vmax.f32 %v941, %v916
    %v946 = vmax.f32 %v942, %v917
    %v947 = vmax.f32 %v943, %v918
    %v948 = vmax.f32 %v944, %v919
    %v949 = vmax.f32 %v945, %v920
    %v950 = vmax.f32 %v946, %v921
    %v951 = vmax.f32 %v947, %v948
    %v952 = vmax.f32 %v949, %v950
    %v953 = vmax.f32 %v951, %v952
    %v954 = vrot.slane %v953, 4
    %v955 = vmax.f32 %v953, %v954
    %v956 = vrot.slane %v955, 2
    %v957 = vmax.f32 %v955, %v956
    %v958 = vrot.slane %v957, 1
    %v959 = vmax.f32 %v957, %v958
    %v960 = vmax.f32 %v922, %v959
    %961 = vst [vmem:[#allocation2] sm:$0x1] %v960
    %v962 = vld [vmem:[#allocation3] sm:$0x1]
    %v963 = vsub.f32 %v890, 30.0
    %v964 = vsub.f32 %v891, 30.0
    %v965 = vsub.f32 %v892, 30.0
    %v966 = vsub.f32 %v893, 30.0
    %v967 = vsub.f32 %v894, 30.0
    %v968 = vsub.f32 %v895, 30.0
    %v969 = vsub.f32 %v896, 30.0
    %v970 = vsub.f32 %v897, 30.0
    %v971 = vsub.f32 %v898, 30.0
    %v972 = vsub.f32 %v899, 30.0
    %v973 = vsub.f32 %v900, 30.0
    %v974 = vsub.f32 %v901, 30.0
    %v975 = vsub.f32 %v902, 30.0
    %v976 = vsub.f32 %v903, 30.0
    %v977 = vsub.f32 %v904, 30.0
    %v978 = vsub.f32 %v905, 30.0
    %v979 = vsub.f32 %v906, 30.0
    %v980 = vsub.f32 %v907, 30.0
    %v981 = vsub.f32 %v908, 30.0
    %v982 = vsub.f32 %v909, 30.0
    %v983 = vsub.f32 %v910, 30.0
    %v984 = vsub.f32 %v911, 30.0
    %v985 = vsub.f32 %v912, 30.0
    %v986 = vsub.f32 %v913, 30.0
    %v987 = vsub.f32 %v914, 30.0
    %v988 = vsub.f32 %v915, 30.0
    %v989 = vsub.f32 %v916, 30.0
    %v990 = vsub.f32 %v917, 30.0
    %v991 = vsub.f32 %v918, 30.0
    %v992 = vsub.f32 %v919, 30.0
    %v993 = vsub.f32 %v920, 30.0
    %v994 = vsub.f32 %v921, 30.0
    %v995 = vmul.f32 %v963, 1.442695
    %v996 = vpow.pop %v995
    %v997 = vmul.f32 %v964, 1.442695
    %v998 = vpow.pop %v997
    %v999 = vmul.f32 %v965, 1.442695
    %v1000 = vpow.pop %v999
    %v1001 = vmul.f32 %v966, 1.442695
    %v1002 = vpow.pop %v1001
    %v1003 = vmul.f32 %v967, 1.442695
    %v1004 = vpow.pop %v1003
    %v1005 = vmul.f32 %v968, 1.442695
    %v1006 = vpow.pop %v1005
    %v1007 = vmul.f32 %v969, 1.442695
    %v1008 = vpow.pop %v1007
    %v1009 = vmul.f32 %v970, 1.442695
    %v1010 = vpow.pop %v1009
    %v1011 = vmul.f32 %v971, 1.442695
    %v1012 = vpow.pop %v1011
    %v1013 = vmul.f32 %v972, 1.442695
    %v1014 = vpow.pop %v1013
    %v1015 = vmul.f32 %v973, 1.442695
    %v1016 = vpow.pop %v1015
    %v1017 = vmul.f32 %v974, 1.442695
    %v1018 = vpow.pop %v1017
    %v1019 = vmul.f32 %v975, 1.442695
    %v1020 = vpow.pop %v1019
    %v1021 = vmul.f32 %v976, 1.442695
    %v1022 = vpow.pop %v1021
    %v1023 = vmul.f32 %v977, 1.442695
    %v1024 = vpow.pop %v1023
    %v1025 = vmul.f32 %v978, 1.442695
    %v1026 = vpow.pop %v1025
    %v1027 = vmul.f32 %v979, 1.442695
    %v1028 = vpow.pop %v1027
    %v1029 = vmul.f32 %v980, 1.442695
    %v1030 = vpow.pop %v1029
    %v1031 = vmul.f32 %v981, 1.442695
    %v1032 = vpow.pop %v1031
    %v1033 = vmul.f32 %v982, 1.442695
    %v1034 = vpow.pop %v1033
    %v1035 = vmul.f32 %v983, 1.442695
    %v1036 = vpow.pop %v1035
    %v1037 = vmul.f32 %v984, 1.442695
    %v1038 = vpow.pop %v1037
    %v1039 = vmul.f32 %v985, 1.442695
    %v1040 = vpow.pop %v1039
    %v1041 = vmul.f32 %v986, 1.442695
    %v1042 = vpow.pop %v1041
    %v1043 = vmul.f32 %v987, 1.442695
    %v1044 = vpow.pop %v1043
    %v1045 = vmul.f32 %v988, 1.442695
    %v1046 = vpow.pop %v1045
    %v1047 = vmul.f32 %v989, 1.442695
    %v1048 = vpow.pop %v1047
    %v1049 = vmul.f32 %v990, 1.442695
    %v1050 = vpow.pop %v1049
    %v1051 = vmul.f32 %v991, 1.442695
    %v1052 = vpow.pop %v1051
    %v1053 = vmul.f32 %v992, 1.442695
    %v1054 = vpow.pop %v1053
    %v1055 = vmul.f32 %v993, 1.442695
    %v1056 = vpow.pop %v1055
    %v1057 = vmul.f32 %v994, 1.442695
    %v1058 = vpow.pop %v1057
    %v1059 = vadd.f32 %v996, %v998
    %v1060 = vadd.f32 %v1059, %v1000
    %v1061 = vadd.f32 %v1060, %v1002
    %v1062 = vadd.f32 %v1061, %v1004
    %v1063 = vadd.f32 %v1062, %v1006
    %v1064 = vadd.f32 %v1063, %v1008
    %v1065 = vadd.f32 %v1064, %v1010
    %v1066 = vadd.f32 %v1065, %v1012
    %v1067 = vadd.f32 %v1066, %v1014
    %v1068 = vadd.f32 %v1067, %v1016
    %v1069 = vadd.f32 %v1068, %v1018
    %v1070 = vadd.f32 %v1069, %v1020
    %v1071 = vadd.f32 %v1070, %v1022
    %v1072 = vadd.f32 %v1071, %v1024
    %v1073 = vadd.f32 %v1072, %v1026
    %v1074 = vadd.f32 %v1073, %v1028
    %v1075 = vadd.f32 %v1074, %v1030
    %v1076 = vadd.f32 %v1075, %v1032
    %v1077 = vadd.f32 %v1076, %v1034
    %v1078 = vadd.f32 %v1077, %v1036
    %v1079 = vadd.f32 %v1078, %v1038
    %v1080 = vadd.f32 %v1079, %v1040
    %v1081 = vadd.f32 %v1080, %v1042
    %v1082 = vadd.f32 %v1081, %v1044
    %v1083 = vadd.f32 %v1082, %v1046
    %v1084 = vadd.f32 %v1083, %v1048
    %v1085 = vadd.f32 %v1084, %v1050
    %v1086 = vadd.f32 %v1085, %v1052
    %v1087 = vadd.f32 %v1086, %v1054
    %v1088 = vadd.f32 %v1087, %v1056
    %v1089 = vadd.f32 %v1088, %v1058
    %v1090 = vrot.slane %v1089, 4
    %v1091 = vadd.f32 %v1089, %v1090
    %v1092 = vrot.slane %v1091, 2
    %v1093 = vadd.f32 %v1091, %v1092
    %v1094 = vrot.slane %v1093, 1
    %v1095 = vadd.f32 %v1093, %v1094
    %v1096 = vadd.f32 %v962, %v1095
    %1097 = vst [vmem:[#allocation3] sm:$0x1] %v1096
    %v1098 = vld [vmem:[#allocation4] sm:$0x1]
    %v1099 = vadd.f32 %v1098, %v669
    %1100 = vst [vmem:[#allocation4] sm:$0x1] %v1099
    %v1101 = vld [vmem:[#allocation3] sm:$0x1]
    %v1102 = vlog2.pop %v1101
    %v1103 = vmul.f32 %v1102, 0.6931472
    %v1104 = vadd.f32 %v1103, 30.0
    %v1105 = vld [vmem:[#allocation4] sm:$0x1]
    %v1106 = vsub.f32 %v1104, %v1105
    %1107 = vst [vmem:[%s3] sm:$0x1] %v1106
    %v1108 = vld [vmem:[#allocation4] sm:$0x1]
    %v1109 = vld [vmem:[#allocation2] sm:$0x1]
    %vm1110 = vcmp.eq.f32.partialorder %v1108, %v1109
    %v1111 = vsel %vm1110, 1, 0
    %v1112 = vcvt.s32.f32 %v1111
    %1113 = vst [vmem:[%s4] sm:$0x1] %v1112
  $region25: #{aam_softmax_forward.1} parent=0 // pred_fallthru
    _
  // Predicated region
  $region26: #{aam_softmax_forward.1} parent=0 // pred_check
    _
  $region27: #{aam_softmax_forward.1} parent=0 // pred_check_branch
    %1115 = sbr.rel (0) target = $region29
  $region28: #{aam_softmax_forward.1} parent=0 // pred_region
    _
  $region29: #{aam_softmax_forward.1} parent=0 // pred_fallthru
    _
  // Predicated region
  $region30: #{aam_softmax_forward.1} parent=0 // pred_check
    _
  $region31: #{aam_softmax_forward.1} parent=0 // pred_check_branch
    %1117 = sbr.rel (0) target = $region33
  $region32: #{aam_softmax_forward.1} parent=0 // pred_region
    _
  $region33: #{aam_softmax_forward.1} parent=0 // pred_fallthru
    _
  // Predicated region
  $region34: #{aam_softmax_forward.1} parent=0 // pred_check
    _
  $region35: #{aam_softmax_forward.1} parent=0 // pred_check_branch
    %1119 = sbr.rel (0) target = $region37
  $region36: #{aam_softmax_forward.1} parent=0 // pred_region
    _
  $region37: #{aam_softmax_forward.1} parent=0 // pred_fallthru
    _
  // Predicated region
  $region38: #{aam_softmax_forward.1} parent=0 // pred_check
    _
  $region39: #{aam_softmax_forward.1} parent=0 // pred_check_branch
    %1121 = sbr.rel (0) target = $region41
  $region40: #{aam_softmax_forward.1} parent=0 // pred_region
    _
  $region41: #{aam_softmax_forward.1} parent=0 // pred_fallthru
    _

</llo_original>
